<compile_context>
chip_gen: v7x
topology: tpu7x:2x2x1
jax: 0.10.0
libtpu: 0.0.40
codegen_flags: <defaults>
</compile_context>

<pallas_src>
import jax
import jax.numpy as jnp
from jax.experimental import pallas as pl
from jax.experimental.pallas import tpu as pltpu

_LANE = 128
_SUBLANE = 8
_NUM_SPLITS = 2            # leading "parallel" grid axis (uses both v7x TCs)
_DEFAULT_TILE_ROWS = 2048  # (2048, 128) f32 tile = 1 MiB; 2 MiB double-buffered,
                           # safely under v7x's 64 MiB VMEM / 32 MiB scoped default.


def _round_up(x, m):
    return ((x + m - 1) // m) * m


def _sumsq_kernel(x_ref, out_ref):
    """One grid step: accumulate partial sums of x^2.

    x_ref:   (tile_rows, 128) VMEM tile of the flattened residual slab
    out_ref: (8, 128) f32 partial-sum slab, resident across the reduction axis
             (same output block index for every step of grid axis 1)
    """
    r = pl.program_id(1)

    @pl.when(r == 0)
    def _():
        out_ref[...] = jnp.zeros_like(out_ref)

    x = x_ref[...].astype(jnp.float32)
    xsq = x * x
    tile_rows = xsq.shape[0]
    # Fold groups of 8 sublanes into one (8, 128) vreg of partial sums.  The
    # reduction is along a non-minor axis, so it lowers to plain VPU vreg adds
    # (no XLU cross-lane reduce inside the streaming loop).
    partial = jnp.sum(xsq.reshape(tile_rows // _SUBLANE, _SUBLANE, _LANE), axis=0)
    out_ref[...] += partial


def homo_loss(residuals, *, tile_rows=_DEFAULT_TILE_ROWS):
    """Pallas implementation of HomoLoss.forward.

    residuals: [n_homo_block, N, 8] or [n_homo_block, 3, N, 8]
    returns: scalar f32 loss
    """
    n_block = residuals.shape[0]
    elems_per_block = 1
    for d in residuals.shape[1:]:
        elems_per_block *= int(d)
    total = n_block * elems_per_block

    # Lane-dense layout: flatten, zero-pad so the slab is rows x 128 with
    # rows divisible by (NUM_SPLITS * tile).  Zeros do not affect sum(x^2).
    flat = residuals.reshape(-1)
    rows_needed = _round_up(pl.cdiv(total, _LANE), _SUBLANE)
    tile = _round_up(min(tile_rows, rows_needed), _SUBLANE)
    rows = _round_up(rows_needed, _NUM_SPLITS * tile)
    pad = rows * _LANE - total
    if pad:
        flat = jnp.pad(flat, (0, pad))
    slab = flat.reshape(rows, _LANE)
    grid_r = rows // (_NUM_SPLITS * tile)  # reduction steps per split

    partials = pl.pallas_call(
        _sumsq_kernel,
        out_shape=jax.ShapeDtypeStruct((_NUM_SPLITS * _SUBLANE, _LANE), jnp.float32),
        grid_spec=pltpu.PrefetchScalarGridSpec(
            num_scalar_prefetch=0,
            grid=(_NUM_SPLITS, grid_r),
            in_specs=[
                # Split c owns row-blocks [c*grid_r, (c+1)*grid_r); r walks them.
                pl.BlockSpec((tile, _LANE), lambda c, r, gr=grid_r: (c * gr + r, 0)),
            ],
            # One (8, 128) partial-sum slab per split; constant along the
            # reduction axis -> resident accumulator, lane-dense (unmasked) store.
            out_specs=pl.BlockSpec((_SUBLANE, _LANE), lambda c, r: (c, 0)),
        ),
        compiler_params=pltpu.CompilerParams(
            dimension_semantics=("parallel", "arbitrary"),
        ),
    )(slab)

    # Single cheap cross-lane reduce of the (16, 128) partials, then the exact
    # algebraic collapse of the per-block means (all blocks have equal size).
    return 0.5 * jnp.sum(partials) / jnp.float32(elems_per_block)


def homo_loss_ref(residuals):
    """Pure-JAX reference mirroring the PyTorch loop."""
    loss = jnp.float32(0.0)
    for b in range(residuals.shape[0]):
        loss = loss + 0.5 * jnp.mean(jnp.square(residuals[b].astype(jnp.float32)))
    return loss


if __name__ == "__main__":
    key = jax.random.PRNGKey(0)

    # no-fpn case: [n_homo_block, N, 8]
    n_homo_block, N = 4, 16
    residuals = jax.random.normal(key, (n_homo_block, N, 8), dtype=jnp.float32)

    loss = homo_loss(residuals)
    jax.block_until_ready(loss)
    ref = homo_loss_ref(residuals)
    assert jnp.allclose(loss, ref, rtol=1e-5, atol=1e-6), (loss, ref)

    # fpn case: [n_homo_block, 3, N, 8]
    residuals_fpn = jax.random.normal(
        jax.random.PRNGKey(1), (n_homo_block, 3, N, 8), dtype=jnp.float32
    )
    loss_fpn = homo_loss(residuals_fpn)
    jax.block_until_ready(loss_fpn)
    ref_fpn = homo_loss_ref(residuals_fpn)
    assert jnp.allclose(loss_fpn, ref_fpn, rtol=1e-5, atol=1e-6), (loss_fpn, ref_fpn)

    # larger multi-tile case to exercise the grid (rows > NUM_SPLITS * tile)
    residuals_big = jax.random.normal(
        jax.random.PRNGKey(2), (8, 4096, 8), dtype=jnp.float32
    )
    loss_big = homo_loss(residuals_big, tile_rows=256)
    jax.block_until_ready(loss_big)
    ref_big = homo_loss_ref(residuals_big)
    assert jnp.allclose(loss_big, ref_big, rtol=1e-5, atol=1e-6), (loss_big, ref_big)

    print("KERNEL_OK")
</pallas_src>

<mosaic_0001>
module attributes {stable_mosaic.version = 11 : i64} {
  func.func @_sumsq_kernel(%arg0: i32, %arg1: i32, %arg2: memref<8x128xf32, #tpu.memory_space<vmem>>, %arg3: memref<8x128xf32, #tpu.memory_space<vmem>>) attributes {dimension_semantics = [#tpu.dimension_semantics<parallel>, #tpu.dimension_semantics<arbitrary>], iteration_bounds = array<i64: 2, 1>, scalar_prefetch = 0 : i64, scratch_operands = 0 : i64, tpu.core_type = #tpu.core_type<tc>, window_params = [{transform_indices = @transform_0, window_bounds = array<i64: 8, 128>}, {transform_indices = @transform_1, window_bounds = array<i64: 8, 128>}]} {
    %c0_i32 = arith.constant 0 : i32
    %0 = arith.cmpi eq, %arg1, %c0_i32 : i32
    %1 = arith.extui %0 : i1 to i32
    %c0_i32_0 = arith.constant 0 : i32
    %2 = arith.cmpi ne, %1, %c0_i32_0 : i32
    scf.if %2 {
      %cst_6 = arith.constant 0.000000e+00 : f32
      %10 = vector.broadcast %cst_6 : f32 to vector<8x128xf32>
      %c0_7 = arith.constant 0 : index
      %c0_8 = arith.constant 0 : index
      %11 = vector.load %arg3[%c0_7, %c0_8] : memref<8x128xf32, #tpu.memory_space<vmem>>, vector<8x128xf32>
      tpu.vector_store %arg3[%c0_7, %c0_8], %10 {strides = array<i32>} : memref<8x128xf32, #tpu.memory_space<vmem>>, vector<8x128xf32>,
    } else {
    }
    %c0 = arith.constant 0 : index
    %c0_1 = arith.constant 0 : index
    %3 = vector.load %arg2[%c0, %c0_1] : memref<8x128xf32, #tpu.memory_space<vmem>>, vector<8x128xf32>
    %4 = arith.mulf %3, %3 : vector<8x128xf32>
    %5 = vector.shape_cast %4 : vector<8x128xf32> to vector<1x8x128xf32>
    %cst = arith.constant dense<0.000000e+00> : vector<8x128xf32>
    %6 = vector.multi_reduction <add>, %5, %cst [0] : vector<1x8x128xf32> to vector<8x128xf32>
    %c0_2 = arith.constant 0 : index
    %c0_3 = arith.constant 0 : index
    %7 = vector.load %arg3[%c0_2, %c0_3] : memref<8x128xf32, #tpu.memory_space<vmem>>, vector<8x128xf32>
    %8 = arith.addf %7, %6 : vector<8x128xf32>
    %c0_4 = arith.constant 0 : index
    %c0_5 = arith.constant 0 : index
    %9 = vector.load %arg3[%c0_4, %c0_5] : memref<8x128xf32, #tpu.memory_space<vmem>>, vector<8x128xf32>
    tpu.vector_store %arg3[%c0_4, %c0_5], %8 {strides = array<i32>} : memref<8x128xf32, #tpu.memory_space<vmem>>, vector<8x128xf32>,
    return
  }
  func.func @transform_0(%arg0: i32, %arg1: i32) -> (i32, i32) {
    %c1_i32 = arith.constant 1 : i32
    %0 = arith.muli %arg0, %c1_i32 : i32
    %1 = arith.addi %0, %arg1 : i32
    %c0_i32 = arith.constant 0 : i32
    %c0_i32_0 = arith.constant 0 : i32
    return %1, %c0_i32 : i32, i32
  }
  func.func @transform_1(%arg0: i32, %arg1: i32) -> (i32, i32) {
    %c0_i32 = arith.constant 0 : i32
    %c0_i32_0 = arith.constant 0 : i32
    return %arg0, %c0_i32 : i32, i32
  }
}

</mosaic_0001>

<llo_original>
// kernel: tpu_custom_call.1
$region0: #{tpu_custom_call.1}
  #allocation0 [shape = 'u32[]', space=smem, size = 0x4, offset = 0x4, fixed_abs, tag = 'smem constant byte address 0x4 - core index']
  #allocation1 [shape = 'u32[144,128]{1,0:T(1,128)}', space=vmem, size = 0x12000, scoped, tag = 'internal scratch']
  %s0 = inlined_call_operand.hbm [shape: f32[16,128], index: 0, kind: input, shape index: {}]
  %s1 = inlined_call_operand.hbm [shape: f32[16,128], index: 1, kind: output, shape index: {}]
  %s2 = sld [smem:[#allocation0]]
  $region45: #{tpu_custom_call.1} parent=0
    _
  %s4 = ssub.s32 1, %s2
  %s5 = scalar_select 0, %s4, %s2
  $region1: #{tpu_custom_call.1} parent=0
    #allocation2 [shape = 'u8[8192]{0}', space=vmem, size = 0x2000, scoped, tag = 'input window, operand 0']
    #allocation3 [shape = 's32[2]{0}', space=sflag, size = 0x8, scoped, tag = 'scoped memory for tpu_custom_call.1']
    #allocation4 [shape = 's32[2]{0}', space=sflag, size = 0x8, scoped, tag = 'scoped memory for tpu_custom_call.1']
    #allocation5 [shape = 'u8[8192]{0}', space=vmem, size = 0x2000, scoped, tag = 'output window, operand 0']
    %6 = vsyncpa [#allocation3], 0
    %s7 = scalar_lea.sflag [#allocation3], 1
    %8 = vsyncpa %s7, 0
    %9 = vsyncpa [#allocation4], 0
    %s10 = scalar_lea.sflag [#allocation4], 1
    %11 = vsyncpa %s10, 0
    loop: start=0, step=1, limit=4
    $region2: #{tpu_custom_call.1} parent=1 // loop_pre_header
      _
    $region3: #{tpu_custom_call.1} parent=1 // loop_header
      %s13 = sphi 0, %s17
      %p14 = scmp.ge.s32.totalorder %s13, 4
      %s20 = sphi 0, %s32
      %s21 = sphi 0, %s28
      %s22 = sphi 0, %s20
      %s23 = sphi 0, %s21
      %s24 = sphi 0, %s22
      %s25 = sphi 0, %s23
      %s37 = sphi 0, %s39
      %s40 = sphi 0, %s37
      %s41 = sphi 0, %s40
      %s57 = sphi 0, %s41
      %s63 = sphi 0, %s65
      %s66 = sphi 0, %s63
      %s67 = sphi 0, %s66
      %s83 = sphi 0, %s67
    $region4: #{tpu_custom_call.1} parent=1 // loop_header_branch
      %16 = sbr.rel (%p14) target = $region8
    $region5: #{tpu_custom_call.1} parent=1 // loop_body
      %s18 = ssub.s32 %s13, 1
      %s19 = ssub.s32 %s13, 2
      %s26 = sadd.s32 1, %s21
      %p27 = scmp.ge.s32.totalorder %s26, 1
      %s28 = scalar_select %p27, 0, %s26
      %s29 = sadd.s32 1, %s20
      %s30 = scalar_select %p27, %s29, %s20
      %p31 = scmp.ge.s32.totalorder %s30, 2
      %s32 = scalar_select %p31, 0, %s30
      %s33 = sadd.s32 %s20, %s21
      %s34 = sadd.s32 %s32, %s28
      %s35 = ssub.s32 %s33, %s34
      %p36 = scmp.eq.s32.totalorder %s35, 0
      %s38 = sadd.s32 %s37, 1
      %s39 = scalar_select %p36, %s37, %s38
      %p42 = pneg %p36
      %p43 = scmp.eq.s32.totalorder %s13, 1
      %p44 = por %p42, %p43
      %p45 = scmp.ne.s32.totalorder %s37, %s40
      %p46 = scmp.eq.s32.totalorder %s13, 0
      %p47 = por %p45, %p46
      %p48 = scmp.ne.s32.totalorder %s37, %s40
      %p49 = scmp.eq.s32.totalorder %s18, 1
      %p50 = por %p48, %p49
      %p51 = scmp.ne.s32.totalorder %s40, %s41
      %p52 = scmp.eq.s32.totalorder %s18, 0
      %p53 = por %p51, %p52
      %p54 = scmp.ne.s32.totalorder %s40, %s41
      %p55 = scmp.eq.s32.totalorder %s19, 1
      %p56 = por %p54, %p55
      %p58 = scmp.ne.s32.totalorder %s41, %s57
      %p59 = scmp.eq.s32.totalorder %s19, 0
      %p60 = por %p58, %p59
      %s61 = ssub.s32 %s20, %s32
      %p62 = scmp.eq.s32.totalorder %s61, 0
      %s64 = sadd.s32 %s63, 1
      %s65 = scalar_select %p62, %s63, %s64
      %p68 = pneg %p62
      %p69 = scmp.eq.s32.totalorder %s13, 1
      %p70 = por %p68, %p69
      %p71 = scmp.ne.s32.totalorder %s63, %s66
      %p72 = scmp.eq.s32.totalorder %s13, 0
      %p73 = por %p71, %p72
      %p74 = scmp.ne.s32.totalorder %s63, %s66
      %p75 = scmp.eq.s32.totalorder %s18, 1
      %p76 = por %p74, %p75
      %p77 = scmp.ne.s32.totalorder %s66, %s67
      %p78 = scmp.eq.s32.totalorder %s18, 0
      %p79 = por %p77, %p78
      %p80 = scmp.ne.s32.totalorder %s66, %s67
      %p81 = scmp.eq.s32.totalorder %s19, 1
      %p82 = por %p80, %p81
      %p84 = scmp.ne.s32.totalorder %s67, %s83
      %p85 = scmp.eq.s32.totalorder %s19, 0
      %p86 = por %p84, %p85
      %p87 = scmp.le.s32.totalorder 1, %s13
      %p88 = scmp.lt.s32.totalorder %s13, 3
      %p89 = pnand %p87, %p88
      %p90 = pneg %p89
      // Predicated region
      $region9: #{tpu_custom_call.1} parent=5 // pred_check
        _
      $region10: #{tpu_custom_call.1} parent=5 // pred_check_branch
        %92 = sbr.rel (%p89) target = $region12
      $region11: #{tpu_custom_call.1} parent=5 // pred_region
        %s93 = ssub.s32 %s13, 1
      $region12: #{tpu_custom_call.1} parent=5 // pred_fallthru
        _
      %p94 = scmp.lt.s32.totalorder %s13, 2
      // Predicated region
      $region13: #{tpu_custom_call.1} parent=5 // pred_check
        %p95 = pneg %p94
      $region14: #{tpu_custom_call.1} parent=5 // pred_check_branch
        %97 = sbr.rel (%p95) target = $region16
      $region15: #{tpu_custom_call.1} parent=5 // pred_region
        // Predicated region
        $region17: #{tpu_custom_call.1} parent=15 // pred_check
          %p98 = pneg %p47
        $region18: #{tpu_custom_call.1} parent=15 // pred_check_branch
          %100 = sbr.rel (%p98) target = $region20
        $region19: #{tpu_custom_call.1} parent=15 // pred_region
          %s101 = sand.u32 %s37, 1
          %s102 = scalar_lea.sflag [#allocation3], %s101
          %s103 = sand.u32 %s37, 1
          %s104 = smul.addr %s103, 8
          %s105 = scalar_lea.vmem [#allocation2], %s104
          %s106 = sadd.s32 %s20, %s21
          %s108 = ssub.s32 128, 128
          %109 = vsyncadd %s102, %s108
          %s110 = smul.addr %s106, 128
          %s111 = scalar_lea.hbm %s0, %s110
          %s113 = sshll.u32 %s105, 4
          %s114 = int_to_ptr.vmem [resolvable:$true] %s113
          %116 = dma.hbm_to_vmem [thread:$0]  %s111, 128, %s114, %s102
        $region20: #{tpu_custom_call.1} parent=15 // pred_fallthru
          _
      $region16: #{tpu_custom_call.1} parent=5 // pred_fallthru
        _
      %p117 = scmp.le.s32.totalorder 1, %s13
      %p118 = scmp.lt.s32.totalorder %s13, 3
      %p119 = pnand %p117, %p118
      %p120 = pneg %p119
      // Predicated region
      $region21: #{tpu_custom_call.1} parent=5 // pred_check
        _
      $region22: #{tpu_custom_call.1} parent=5 // pred_check_branch
        %122 = sbr.rel (%p119) target = $region24
      $region23: #{tpu_custom_call.1} parent=5 // pred_region
        %s123 = ssub.s32 %s13, 1
        %s124 = sand.u32 %s40, 1
        %s125 = scalar_lea.sflag [#allocation3], %s124
        %s126 = sand.u32 %s40, 1
        %s127 = smul.addr %s126, 8
        %s128 = scalar_lea.vmem [#allocation2], %s127
        // Predicated region
        $region25: #{tpu_custom_call.1} parent=23 // pred_check
          %p129 = pneg %p53
        $region26: #{tpu_custom_call.1} parent=23 // pred_check_branch
          %131 = sbr.rel (%p129) target = $region28
        $region27: #{tpu_custom_call.1} parent=23 // pred_region
          %132 = dma.done %s125, 128
        $region28: #{tpu_custom_call.1} parent=23 // pred_fallthru
          _
        %s133 = sand.u32 %s40, 1
        %s134 = scalar_lea.sflag [#allocation3], %s133
        %s135 = sand.u32 %s40, 1
        %s136 = smul.addr %s135, 8
        %s137 = scalar_lea.vmem [#allocation2], %s136
        %p138 = pneg %p53
        %p139 = pneg %p50
        %p140 = pneg %p79
        %p141 = pneg %p76
        %s142 = sand.u32 %s66, 1
        %s143 = scalar_lea.sflag [#allocation4], %s142
        %s144 = sand.u32 %s66, 1
        %s145 = smul.addr %s144, 8
        %s146 = scalar_lea.vmem [#allocation5], %s145
        %s147 = sadd.s32 %s22, %s23
        %p148 = scmp.eq.s32.totalorder %s23, 0
        // Predicated region
        $region29: #{tpu_custom_call.1} parent=23 // pred_check
          %p149 = pneg %p148
        $region30: #{tpu_custom_call.1} parent=23 // pred_check_branch
          %151 = sbr.rel (%p149) target = $region32
        $region31: #{tpu_custom_call.1} parent=23 // pred_region
          %152 = vst [vmem:[%s146] sm:$0xff] 0.0
        $region32: #{tpu_custom_call.1} parent=23 // pred_fallthru
          _
        %v153 = vld [vmem:[%s128] sm:$0xff]
        %v154 = vmul.f32 %v153, %v153
        %v155 = vadd.f32 %v154, 0.0
        %v156 = vld [vmem:[%s146] sm:$0xff]
        %v157 = vadd.f32 %v156, %v155
        %158 = vst [vmem:[%s146] sm:$0xff] %v157
        %s159 = sand.u32 %s66, 1
        %s160 = scalar_lea.sflag [#allocation4], %s159
        %s161 = sand.u32 %s66, 1
        %s162 = smul.addr %s161, 8
        %s163 = scalar_lea.vmem [#allocation5], %s162
        // Predicated region
        $region33: #{tpu_custom_call.1} parent=23 // pred_check
          %p164 = pneg %p76
        $region34: #{tpu_custom_call.1} parent=23 // pred_check_branch
          %166 = sbr.rel (%p164) target = $region36
        $region35: #{tpu_custom_call.1} parent=23 // pred_region
          %s168 = ssub.s32 128, 128
          %169 = vsyncadd %s160, %s168
          %s170 = smul.addr %s22, 128
          %s171 = scalar_lea.hbm %s1, %s170
          %s173 = sshll.u32 %s163, 4
          %s174 = int_to_ptr.vmem [resolvable:$true] %s173
          %176 = dma.vmem_to_hbm [thread:$0]  %s174, 128, %s171, %s160
        $region36: #{tpu_custom_call.1} parent=23 // pred_fallthru
          _
      $region24: #{tpu_custom_call.1} parent=5 // pred_fallthru
        _
      %p177 = scmp.le.s32.totalorder 2, %s13
      // Predicated region
      $region37: #{tpu_custom_call.1} parent=5 // pred_check
        %p178 = pneg %p177
      $region38: #{tpu_custom_call.1} parent=5 // pred_check_branch
        %180 = sbr.rel (%p178) target = $region40
      $region39: #{tpu_custom_call.1} parent=5 // pred_region
        %s181 = ssub.s32 %s13, 2
        // Predicated region
        $region41: #{tpu_custom_call.1} parent=39 // pred_check
          %p182 = pneg %p82
        $region42: #{tpu_custom_call.1} parent=39 // pred_check_branch
          %184 = sbr.rel (%p182) target = $region44
        $region43: #{tpu_custom_call.1} parent=39 // pred_region
          %s185 = sand.u32 %s67, 1
          %s186 = scalar_lea.sflag [#allocation4], %s185
          %s187 = sand.u32 %s67, 1
          %s188 = smul.addr %s187, 8
          %s189 = scalar_lea.vmem [#allocation5], %s188
          %190 = dma.done %s186, 128
        $region44: #{tpu_custom_call.1} parent=39 // pred_fallthru
          _
      $region40: #{tpu_custom_call.1} parent=5 // pred_fallthru
        _
    $region6: #{tpu_custom_call.1} parent=1 // loop_footer
      %s17 = sadd.s32 1, %s13
    $region7: #{tpu_custom_call.1} parent=1 // loop_footer_branch
      %12 = sbr.rel target = $region3
    $region8: #{tpu_custom_call.1} parent=1 // loop_exit
      _
    %191 = vsyncpa [#allocation3], 1
    %s192 = scalar_lea.sflag [#allocation3], 1
    %193 = vsyncpa %s192, 1
    %194 = vsyncpa [#allocation4], 1
    %s195 = scalar_lea.sflag [#allocation4], 1
    %196 = vsyncpa %s195, 1

</llo_original>
